<compile_context>
chip_gen: v6e
topology: v6e:2x2x1
jax: 0.10.0
libtpu: 0.0.40
codegen_flags: <defaults>
</compile_context>

<pallas_src>
import math

import numpy as np
import jax
import jax.numpy as jnp
from jax import lax
from jax.experimental import pallas as pl
from jax.experimental.pallas import tpu as pltpu

# ----------------------------- hyper parameters -----------------------------
N_HEADS = 4
N_DIMS = 32
TOTAL_EX = 50
TOTAL_CAT = 10
SEQ_LEN = 8                      # tokens per sequence = SEQ_LEN - 1
TIME_WIDTH = 20
BATCH = 2

L = SEQ_LEN - 1                  # 7 real tokens
L_PAD = 8                        # pad to a full sublane; extra row is inert
N_ROWS = BATCH * L_PAD           # 16 folded (batch, token) rows
HEAD_DIM = N_DIMS // N_HEADS     # 8
N_STACK = N_HEADS * N_ROWS       # 64 head-stacked rows
LN_EPS = 1e-5

# packed embedding slab row layout: [exercise | category | elapsetime | response | position]
OFF_EXE = 0
OFF_CAT = OFF_EXE + TOTAL_EX
OFF_ETIME = OFF_CAT + TOTAL_CAT
OFF_RESP = OFF_ETIME + TIME_WIDTH
OFF_POS = OFF_RESP + TOTAL_EX
V_TOTAL = OFF_POS + SEQ_LEN              # 138
V_PAD = ((V_TOTAL + 7) // 8) * 8         # 144 (multiple of 8 sublanes)
N_LOOKUPS = 5                            # exe, cat, etime, resp, pos

# ------------------------- weight-slab row layout ----------------------------
SLAB_W = 96                              # common lane width of the packed slab
R_EMB = 0                                # (144, 32)  packed embedding tables
R_WQKV = R_EMB + V_PAD                   # (32, 96)   per-head [Wq_h|Wk_h|Wv_h] column groups
R_WPROJ = R_WQKV + N_DIMS                # (32, 96)   [Wo | W1 | W2]
R_VEC = R_WPROJ + N_DIMS                 # (8, 96)    row0 = qkv bias; rows 1..7 = 32-wide vectors
R_BIAS = R_VEC + 8                       # (64, 64)   additive attention mask (precomputed)
SLAB_ROWS = R_BIAS + N_STACK             # 280 (multiple of 8)


def _layer_norm(v, g, b):
    # one-pass variance: the two cross-lane reductions are independent -> overlap in the XLU
    mu = jnp.mean(v, axis=-1, keepdims=True)
    ms = jnp.mean(v * v, axis=-1, keepdims=True)
    var = ms - mu * mu
    return (v - mu) * lax.rsqrt(var + LN_EPS) * g + b


# --------------------------------- kernel -----------------------------------
def encoder_kernel(idx_ref, slab_ref, o_ref):
    H, HD, D, N = N_HEADS, HEAD_DIM, N_DIMS, N_ROWS

    # ---- unpack the weight slab (sublane-aligned ref loads + value lane slices) ----
    emb = slab_ref[R_EMB:R_EMB + V_PAD, :][:, 0:D]                 # (144, 32)
    wqkv = slab_ref[R_WQKV:R_WQKV + D, :]                          # (32, 96)
    wproj = slab_ref[R_WPROJ:R_WPROJ + D, :]                       # (32, 96)
    wo, w1, w2 = wproj[:, 0:D], wproj[:, D:2 * D], wproj[:, 2 * D:3 * D]
    vec = slab_ref[R_VEC:R_VEC + 8, :]                             # (8, 96)
    b_qkv = vec[0:1, :]                                            # (1, 96)
    ln1_g, ln1_b = vec[1:2, 0:D], vec[2:3, 0:D]
    ln2_g, ln2_b = vec[3:4, 0:D], vec[4:5, 0:D]
    b_o, b_1, b_2 = vec[5:6, 0:D], vec[6:7, 0:D], vec[7:8, 0:D]
    bias = slab_ref[R_BIAS:R_BIAS + N_STACK, :][:, 0:N_STACK]      # (64, 64) additive mask

    # ---- fused embedding lookups: multi-hot (16,144) @ emb (144,32) on the MXU ----
    idx = idx_ref[...]                                             # (16, 5) int32, slab offsets applied
    vocab = lax.broadcasted_iota(jnp.int32, (N, V_PAD), 1)
    hot_b = vocab == idx[:, 0:1]
    for t in range(1, N_LOOKUPS):      # slab offset ranges are disjoint -> OR == one-hot sum
        hot_b = hot_b | (vocab == idx[:, t:t + 1])
    hot = hot_b.astype(jnp.float32)                                # single bool->f32 convert
    x = jnp.dot(hot, emb, preferred_element_type=jnp.float32)      # (16, 32) interaction

    # ---- layer_norm1 (q_input == kv_input) ----
    xq = _layer_norm(x, ln1_g, ln1_b)                              # (16, 32)

    # ---- fused QKV: one lane-dense matmul, then head-stack along sublanes ----
    qkv = jnp.dot(xq, wqkv, preferred_element_type=jnp.float32) + b_qkv      # (16, 96)
    # columns are grouped per head as [q_h | k_h | v_h] (24 lanes each), so a single
    # sublane concat of 4 lane slices yields the head-stacked (64, 24) tensor.
    qkv_stk = jnp.concatenate(
        [qkv[:, 3 * HD * h:3 * HD * (h + 1)] for h in range(H)], axis=0)     # (64, 24)
    q = qkv_stk[:, 0:HD]                                           # (64, 8)
    k = qkv_stk[:, HD:2 * HD]                                      # (64, 8)
    v = qkv_stk[:, 2 * HD:3 * HD]                                  # (64, 8)

    # ---- all-head scores in ONE matmul + precomputed block-diagonal additive mask ----
    s = lax.dot_general(q, k, (((1,), (1,)), ((), ())),            # contract head_dim of both
                        preferred_element_type=jnp.float32) * (1.0 / math.sqrt(HD))
    s = s + bias                                                   # same-head & same-batch & causal
    m = jnp.max(s, axis=-1, keepdims=True)
    p = jnp.exp(s - m)
    denom = jnp.sum(p, axis=-1, keepdims=True)
    r = pl.reciprocal(denom, approx=True)                          # EUP reciprocal
    r = r * (2.0 - denom * r)                                      # one Newton step -> ~f32 accuracy
    p = p * r
    ctx = jnp.dot(p, v, preferred_element_type=jnp.float32)        # (64, 8)

    # ---- merge heads back into lanes, single output projection ----
    ctx2d = jnp.concatenate([ctx[N * h:N * (h + 1), :] for h in range(H)], axis=1)   # (16, 32)
    attn = jnp.dot(ctx2d, wo, preferred_element_type=jnp.float32) + b_o
    out_att = attn + xq                                            # residual with query_norm

    # ---- layer_norm2 + FFN (+ residual) ----
    y = _layer_norm(out_att, ln2_g, ln2_b)
    h1 = jnp.maximum(jnp.dot(y, w1, preferred_element_type=jnp.float32) + b_1, 0.0)
    ffn = jnp.dot(h1, w2, preferred_element_type=jnp.float32) + b_2
    o_ref[...] = ffn + y


# --------------------------- one-time weight packing --------------------------
def _attn_bias():
    """(64,64) additive mask over head-stacked rows r = head*16 + batch*8 + token."""
    r = np.arange(N_STACK)
    head, batch, tok = r // N_ROWS, (r % N_ROWS) // L_PAD, r % L_PAD
    allowed = ((head[:, None] == head[None, :])
               & (batch[:, None] == batch[None, :])
               & (tok[None, :] <= tok[:, None]))                   # causal ('lt')
    return np.where(allowed, 0.0, -1e30).astype(np.float32)


def pack_params(params):
    """Pack all module weights into a single (280, 96) f32 slab. Call ONCE at init."""
    D, H, HD = N_DIMS, N_HEADS, HEAD_DIM
    f32 = jnp.float32

    def pad_w(a):
        a = jnp.asarray(a, f32)
        return jnp.pad(a, ((0, 0), (0, SLAB_W - a.shape[1])))

    emb = jnp.concatenate(
        [params["exercise_embed"], params["category_embed"], params["elapsetime_embed"],
         params["response_embed"], params["position_embed"],
         jnp.zeros((V_PAD - V_TOTAL, D), f32)], axis=0)                            # (144, 32)

    # PyTorch Linear: y = x @ W.T  -> transposed weights; per-head column groups [Wq_h|Wk_h|Wv_h]
    wq_t, wk_t, wv_t = params["wq"].T, params["wk"].T, params["wv"].T              # (32, 32)
    wqkv = jnp.concatenate(
        [jnp.concatenate([wq_t[:, h * HD:(h + 1) * HD],
                          wk_t[:, h * HD:(h + 1) * HD],
                          wv_t[:, h * HD:(h + 1) * HD]], axis=1) for h in range(H)],
        axis=1)                                                                    # (32, 96)
    b_qkv = jnp.concatenate(
        [jnp.concatenate([params["bq"][h * HD:(h + 1) * HD],
                          params["bk"][h * HD:(h + 1) * HD],
                          params["bv"][h * HD:(h + 1) * HD]]) for h in range(H)])  # (96,)

    wproj = jnp.concatenate([params["wo"].T, params["ffn_w1"].T, params["ffn_w2"].T],
                            axis=1)                                                # (32, 96)

    vecs32 = jnp.stack([params["ln1_g"], params["ln1_b"], params["ln2_g"], params["ln2_b"],
                        params["bo"], params["ffn_b1"], params["ffn_b2"]])         # (7, 32)
    vec_rows = jnp.concatenate([b_qkv[None, :], pad_w(vecs32)], axis=0)            # (8, 96)

    bias = pad_w(jnp.asarray(_attn_bias()))                                        # (64, 96)

    slab = jnp.concatenate([pad_w(emb), wqkv, wproj, vec_rows, bias],
                           axis=0).astype(f32)                                     # (280, 96)
    assert slab.shape == (SLAB_ROWS, SLAB_W)
    return slab


# ------------------------------ per-call wrapper ------------------------------
@jax.jit
def encoder_block_pallas(slab, input_e, category, elapse_time, response):
    # per-call glue is input-dependent only: pad L -> L_PAD, apply slab offsets, flatten
    def pad_idx(a):
        return jnp.pad(a.astype(jnp.int32), ((0, 0), (0, L_PAD - L)))
    pos_idx = jnp.broadcast_to(jnp.arange(L_PAD, dtype=jnp.int32)[None, :], (BATCH, L_PAD))
    idx = jnp.stack([pad_idx(input_e) + OFF_EXE,
                     pad_idx(category) + OFF_CAT,
                     pad_idx(elapse_time) + OFF_ETIME,
                     pad_idx(response) + OFF_RESP,
                     pos_idx + OFF_POS], axis=-1).reshape(N_ROWS, N_LOOKUPS)

    vmem = pltpu.MemorySpace.VMEM
    out = pl.pallas_call(
        encoder_kernel,
        out_shape=jax.ShapeDtypeStruct((N_ROWS, N_DIMS), jnp.float32),
        in_specs=[pl.BlockSpec(memory_space=vmem), pl.BlockSpec(memory_space=vmem)],
        out_specs=pl.BlockSpec(memory_space=vmem),
    )(idx, slab)
    # drop the padded token row of each batch element
    return out.reshape(BATCH, L_PAD, N_DIMS)[:, :L, :]


# ---------------------------- pure-JAX reference -----------------------------
def encoder_block_ref(params, input_e, category, elapse_time, response):
    D, H, hd = N_DIMS, N_HEADS, HEAD_DIM
    pos = jnp.arange(L)
    x = (params["category_embed"][category]
         + params["exercise_embed"][input_e]
         + params["elapsetime_embed"][elapse_time]
         + params["response_embed"][response]
         + params["position_embed"][pos][None, :, :]).astype(jnp.float32)

    def ln(v, g, b):
        mu = v.mean(-1, keepdims=True)
        var = ((v - mu) ** 2).mean(-1, keepdims=True)
        return (v - mu) / jnp.sqrt(var + LN_EPS) * g + b

    xq = ln(x, params["ln1_g"], params["ln1_b"])
    q = xq @ params["wq"].T + params["bq"]
    k = xq @ params["wk"].T + params["bk"]
    v = xq @ params["wv"].T + params["bv"]
    q = q.reshape(BATCH, L, H, hd).transpose(0, 2, 1, 3)
    k = k.reshape(BATCH, L, H, hd).transpose(0, 2, 1, 3)
    v = v.reshape(BATCH, L, H, hd).transpose(0, 2, 1, 3)
    s = jnp.einsum("bhqd,bhkd->bhqk", q, k) / math.sqrt(hd)
    allowed = jnp.tril(jnp.ones((L, L), dtype=bool))
    s = jnp.where(allowed, s, -1e30)
    p = jax.nn.softmax(s, axis=-1)
    attn = jnp.einsum("bhqk,bhkd->bhqd", p, v).transpose(0, 2, 1, 3).reshape(BATCH, L, D)
    attn = attn @ params["wo"].T + params["bo"]
    out_atten = attn + xq
    y = ln(out_atten, params["ln2_g"], params["ln2_b"])
    ffn = (jnp.maximum(y @ params["ffn_w1"].T + params["ffn_b1"], 0.0)
           @ params["ffn_w2"].T + params["ffn_b2"])
    return ffn + y


# ------------------------------- param init ----------------------------------
def init_params(key):
    D = N_DIMS
    ks = jax.random.split(key, 16)
    nrm = lambda k, shape, s=1.0: jax.random.normal(k, shape, jnp.float32) * s
    return {
        # nn.Embedding default init ~ N(0, 1)
        "exercise_embed":   nrm(ks[0], (TOTAL_EX, D)),
        "category_embed":   nrm(ks[1], (TOTAL_CAT, D)),
        "position_embed":   nrm(ks[2], (SEQ_LEN, D)),
        "response_embed":   nrm(ks[3], (TOTAL_EX, D)),
        "elapsetime_embed": nrm(ks[4], (TIME_WIDTH, D)),
        # multihead.layer_norm1 / layer_norm2
        "ln1_g": jnp.ones((D,), jnp.float32), "ln1_b": jnp.zeros((D,), jnp.float32),
        "ln2_g": jnp.ones((D,), jnp.float32), "ln2_b": jnp.zeros((D,), jnp.float32),
        # nn.MultiheadAttention in_proj (split into q/k/v) + out_proj
        "wq": nrm(ks[5], (D, D), 0.1), "bq": nrm(ks[6], (D,), 0.05),
        "wk": nrm(ks[7], (D, D), 0.1), "bk": nrm(ks[8], (D,), 0.05),
        "wv": nrm(ks[9], (D, D), 0.1), "bv": nrm(ks[10], (D,), 0.05),
        "wo": nrm(ks[11], (D, D), 0.1), "bo": nrm(ks[12], (D,), 0.05),
        # FFN: Linear(D, D) -> ReLU -> Linear(D, D)
        "ffn_w1": nrm(ks[13], (D, D), 0.1), "ffn_b1": nrm(ks[14], (D,), 0.05),
        "ffn_w2": nrm(ks[15], (D, D), 0.1), "ffn_b2": jnp.zeros((D,), jnp.float32),
        # NOTE: EncoderBlock.layer_norm is declared in __init__ but unused in forward.
    }


if __name__ == "__main__":
    key = jax.random.PRNGKey(0)
    pkey, dkey = jax.random.split(key)
    params = init_params(pkey)
    slab = pack_params(params)            # one-time packing, outside the per-call hot path

    dk = jax.random.split(dkey, 4)
    input_e     = jax.random.randint(dk[0], (BATCH, L), 0, TOTAL_EX)
    category    = jax.random.randint(dk[1], (BATCH, L), 0, TOTAL_CAT)
    elapse_time = jax.random.randint(dk[2], (BATCH, L), 0, TIME_WIDTH)
    response    = jax.random.randint(dk[3], (BATCH, L), 0, TOTAL_EX)

    out = encoder_block_pallas(slab, input_e, category, elapse_time, response)
    out = jax.block_until_ready(out)

    ref = encoder_block_ref(params, input_e, category, elapse_time, response)
    assert out.shape == (BATCH, L, N_DIMS)
    assert jnp.allclose(out, ref, rtol=2e-4, atol=2e-4), "mismatch vs pure-JAX reference"
    print("KERNEL_OK")
</pallas_src>

<mosaic_0001>
module attributes {stable_mosaic.version = 11 : i64} {
  func.func @encoder_kernel(%arg0: memref<16x5xi32, #tpu.memory_space<vmem>>, %arg1: memref<280x96xf32, #tpu.memory_space<vmem>>, %arg2: memref<16x32xf32, #tpu.memory_space<vmem>>) attributes {dimension_semantics = [], scalar_prefetch = 0 : i64, scratch_operands = 0 : i64, tpu.core_type = #tpu.core_type<tc>} {
    %c0 = arith.constant 0 : index
    %c0_0 = arith.constant 0 : index
    %0 = vector.load %arg1[%c0, %c0_0] : memref<280x96xf32, #tpu.memory_space<vmem>>, vector<144x96xf32>
    %1 = vector.extract_strided_slice %0 {offsets = [0, 0], sizes = [144, 32], strides = [1, 1]} : vector<144x96xf32> to vector<144x32xf32>
    %c144 = arith.constant 144 : index
    %c0_1 = arith.constant 0 : index
    %2 = vector.load %arg1[%c144, %c0_1] : memref<280x96xf32, #tpu.memory_space<vmem>>, vector<32x96xf32>
    %c176 = arith.constant 176 : index
    %c0_2 = arith.constant 0 : index
    %3 = vector.load %arg1[%c176, %c0_2] : memref<280x96xf32, #tpu.memory_space<vmem>>, vector<32x96xf32>
    %4 = vector.extract_strided_slice %3 {offsets = [0, 0], sizes = [32, 32], strides = [1, 1]} : vector<32x96xf32> to vector<32x32xf32>
    %5 = vector.extract_strided_slice %3 {offsets = [0, 32], sizes = [32, 32], strides = [1, 1]} : vector<32x96xf32> to vector<32x32xf32>
    %6 = vector.extract_strided_slice %3 {offsets = [0, 64], sizes = [32, 32], strides = [1, 1]} : vector<32x96xf32> to vector<32x32xf32>
    %c208 = arith.constant 208 : index
    %c0_3 = arith.constant 0 : index
    %7 = vector.load %arg1[%c208, %c0_3] : memref<280x96xf32, #tpu.memory_space<vmem>>, vector<8x96xf32>
    %8 = vector.extract_strided_slice %7 {offsets = [0, 0], sizes = [1, 96], strides = [1, 1]} : vector<8x96xf32> to vector<1x96xf32>
    %9 = vector.extract_strided_slice %7 {offsets = [1, 0], sizes = [1, 32], strides = [1, 1]} : vector<8x96xf32> to vector<1x32xf32>
    %10 = vector.extract_strided_slice %7 {offsets = [2, 0], sizes = [1, 32], strides = [1, 1]} : vector<8x96xf32> to vector<1x32xf32>
    %11 = vector.extract_strided_slice %7 {offsets = [3, 0], sizes = [1, 32], strides = [1, 1]} : vector<8x96xf32> to vector<1x32xf32>
    %12 = vector.extract_strided_slice %7 {offsets = [4, 0], sizes = [1, 32], strides = [1, 1]} : vector<8x96xf32> to vector<1x32xf32>
    %13 = vector.extract_strided_slice %7 {offsets = [5, 0], sizes = [1, 32], strides = [1, 1]} : vector<8x96xf32> to vector<1x32xf32>
    %14 = vector.extract_strided_slice %7 {offsets = [6, 0], sizes = [1, 32], strides = [1, 1]} : vector<8x96xf32> to vector<1x32xf32>
    %15 = vector.extract_strided_slice %7 {offsets = [7, 0], sizes = [1, 32], strides = [1, 1]} : vector<8x96xf32> to vector<1x32xf32>
    %c216 = arith.constant 216 : index
    %c0_4 = arith.constant 0 : index
    %16 = vector.load %arg1[%c216, %c0_4] : memref<280x96xf32, #tpu.memory_space<vmem>>, vector<64x96xf32>
    %17 = vector.extract_strided_slice %16 {offsets = [0, 0], sizes = [64, 64], strides = [1, 1]} : vector<64x96xf32> to vector<64x64xf32>
    %c0_5 = arith.constant 0 : index
    %c0_6 = arith.constant 0 : index
    %18 = vector.load %arg0[%c0_5, %c0_6] : memref<16x5xi32, #tpu.memory_space<vmem>>, vector<16x5xi32>
    %19 = tpu.iota {dimensions = array<i32: 1>} : vector<16x144xi32>
    %20 = vector.extract_strided_slice %18 {offsets = [0, 0], sizes = [16, 1], strides = [1, 1]} : vector<16x5xi32> to vector<16x1xi32>
    %21 = vector.broadcast %20 : vector<16x1xi32> to vector<16x144xi32>
    %22 = arith.cmpi eq, %19, %21 : vector<16x144xi32>
    %23 = vector.extract_strided_slice %18 {offsets = [0, 1], sizes = [16, 1], strides = [1, 1]} : vector<16x5xi32> to vector<16x1xi32>
    %24 = vector.broadcast %23 : vector<16x1xi32> to vector<16x144xi32>
    %25 = arith.cmpi eq, %19, %24 : vector<16x144xi32>
    %26 = arith.ori %22, %25 : vector<16x144xi1>
    %27 = vector.extract_strided_slice %18 {offsets = [0, 2], sizes = [16, 1], strides = [1, 1]} : vector<16x5xi32> to vector<16x1xi32>
    %28 = vector.broadcast %27 : vector<16x1xi32> to vector<16x144xi32>
    %29 = arith.cmpi eq, %19, %28 : vector<16x144xi32>
    %30 = arith.ori %26, %29 : vector<16x144xi1>
    %31 = vector.extract_strided_slice %18 {offsets = [0, 3], sizes = [16, 1], strides = [1, 1]} : vector<16x5xi32> to vector<16x1xi32>
    %32 = vector.broadcast %31 : vector<16x1xi32> to vector<16x144xi32>
    %33 = arith.cmpi eq, %19, %32 : vector<16x144xi32>
    %34 = arith.ori %30, %33 : vector<16x144xi1>
    %35 = vector.extract_strided_slice %18 {offsets = [0, 4], sizes = [16, 1], strides = [1, 1]} : vector<16x5xi32> to vector<16x1xi32>
    %36 = vector.broadcast %35 : vector<16x1xi32> to vector<16x144xi32>
    %37 = arith.cmpi eq, %19, %36 : vector<16x144xi32>
    %38 = arith.ori %34, %37 : vector<16x144xi1>
    %39 = arith.extui %38 : vector<16x144xi1> to vector<16x144xi32>
    %40 = arith.sitofp %39 : vector<16x144xi32> to vector<16x144xf32>
    %cst = arith.constant dense<0.000000e+00> : vector<16x32xf32>
    %41 = tpu.matmul %40, %1, %cst {dimension_numbers = #tpu.dot_dimension_numbers<[1], [0], [0], [1], [0, 0, 1, 1], [], []>} : vector<16x144xf32>, vector<144x32xf32>, vector<16x32xf32> -> vector<16x32xf32>
    %cst_7 = arith.constant dense<0.000000e+00> : vector<16xf32>
    %42 = vector.multi_reduction <add>, %41, %cst_7 [1] : vector<16x32xf32> to vector<16xf32>
    %43 = vector.shape_cast %42 : vector<16xf32> to vector<16x1xf32>
    %cst_8 = arith.constant 3.200000e+01 : f32
    %44 = vector.broadcast %cst_8 : f32 to vector<16x1xf32>
    %45 = arith.divf %43, %44 : vector<16x1xf32>
    %46 = arith.mulf %41, %41 : vector<16x32xf32>
    %cst_9 = arith.constant dense<0.000000e+00> : vector<16xf32>
    %47 = vector.multi_reduction <add>, %46, %cst_9 [1] : vector<16x32xf32> to vector<16xf32>
    %48 = vector.shape_cast %47 : vector<16xf32> to vector<16x1xf32>
    %cst_10 = arith.constant 3.200000e+01 : f32
    %49 = vector.broadcast %cst_10 : f32 to vector<16x1xf32>
    %50 = arith.divf %48, %49 : vector<16x1xf32>
    %51 = arith.mulf %45, %45 : vector<16x1xf32>
    %52 = arith.subf %50, %51 : vector<16x1xf32>
    %53 = vector.broadcast %45 : vector<16x1xf32> to vector<16x32xf32>
    %54 = arith.subf %41, %53 : vector<16x32xf32>
    %cst_11 = arith.constant 9.99999974E-6 : f32
    %55 = vector.broadcast %cst_11 : f32 to vector<16x1xf32>
    %56 = arith.addf %52, %55 : vector<16x1xf32>
    %57 = math.rsqrt %56 : vector<16x1xf32>
    %58 = vector.broadcast %57 : vector<16x1xf32> to vector<16x32xf32>
    %59 = arith.mulf %54, %58 : vector<16x32xf32>
    %60 = vector.broadcast %9 : vector<1x32xf32> to vector<16x32xf32>
    %61 = arith.mulf %59, %60 : vector<16x32xf32>
    %62 = vector.broadcast %10 : vector<1x32xf32> to vector<16x32xf32>
    %63 = arith.addf %61, %62 : vector<16x32xf32>
    %cst_12 = arith.constant dense<0.000000e+00> : vector<16x96xf32>
    %64 = tpu.matmul %63, %2, %cst_12 {dimension_numbers = #tpu.dot_dimension_numbers<[1], [0], [0], [1], [0, 0, 1, 1], [], []>} : vector<16x32xf32>, vector<32x96xf32>, vector<16x96xf32> -> vector<16x96xf32>
    %65 = vector.broadcast %8 : vector<1x96xf32> to vector<16x96xf32>
    %66 = arith.addf %64, %65 : vector<16x96xf32>
    %67 = vector.extract_strided_slice %66 {offsets = [0, 0], sizes = [16, 24], strides = [1, 1]} : vector<16x96xf32> to vector<16x24xf32>
    %68 = vector.extract_strided_slice %66 {offsets = [0, 24], sizes = [16, 24], strides = [1, 1]} : vector<16x96xf32> to vector<16x24xf32>
    %69 = vector.extract_strided_slice %66 {offsets = [0, 48], sizes = [16, 24], strides = [1, 1]} : vector<16x96xf32> to vector<16x24xf32>
    %70 = vector.extract_strided_slice %66 {offsets = [0, 72], sizes = [16, 24], strides = [1, 1]} : vector<16x96xf32> to vector<16x24xf32>
    %71 = tpu.concatenate %67, %68, %69, %70 in 0 : vector<16x24xf32>, vector<16x24xf32>, vector<16x24xf32>, vector<16x24xf32> -> vector<64x24xf32>
    %72 = vector.extract_strided_slice %71 {offsets = [0, 0], sizes = [64, 8], strides = [1, 1]} : vector<64x24xf32> to vector<64x8xf32>
    %73 = vector.extract_strided_slice %71 {offsets = [0, 8], sizes = [64, 8], strides = [1, 1]} : vector<64x24xf32> to vector<64x8xf32>
    %74 = vector.extract_strided_slice %71 {offsets = [0, 16], sizes = [64, 8], strides = [1, 1]} : vector<64x24xf32> to vector<64x8xf32>
    %cst_13 = arith.constant dense<0.000000e+00> : vector<64x64xf32>
    %75 = tpu.matmul %72, %73, %cst_13 {dimension_numbers = #tpu.dot_dimension_numbers<[1], [1], [0], [0], [0, 0, 1, 0], [], []>} : vector<64x8xf32>, vector<64x8xf32>, vector<64x64xf32> -> vector<64x64xf32>
    %cst_14 = arith.constant 0.353553385 : f32
    %76 = vector.broadcast %cst_14 : f32 to vector<64x64xf32>
    %77 = arith.mulf %75, %76 : vector<64x64xf32>
    %78 = arith.addf %77, %17 : vector<64x64xf32>
    %cst_15 = arith.constant dense<0xFF800000> : vector<64xf32>
    %79 = vector.multi_reduction <maximumf>, %78, %cst_15 [1] : vector<64x64xf32> to vector<64xf32>
    %80 = vector.shape_cast %79 : vector<64xf32> to vector<64x1xf32>
    %81 = vector.broadcast %80 : vector<64x1xf32> to vector<64x64xf32>
    %82 = arith.subf %78, %81 : vector<64x64xf32>
    %83 = math.exp %82 : vector<64x64xf32>
    %cst_16 = arith.constant dense<0.000000e+00> : vector<64xf32>
    %84 = vector.multi_reduction <add>, %83, %cst_16 [1] : vector<64x64xf32> to vector<64xf32>
    %85 = vector.shape_cast %84 : vector<64xf32> to vector<64x1xf32>
    %86 = tpu.reciprocal %85 {approx = true} : vector<64x1xf32> -> vector<64x1xf32>
    %87 = arith.mulf %85, %86 : vector<64x1xf32>
    %cst_17 = arith.constant 2.000000e+00 : f32
    %88 = vector.broadcast %cst_17 : f32 to vector<64x1xf32>
    %89 = arith.subf %88, %87 : vector<64x1xf32>
    %90 = arith.mulf %86, %89 : vector<64x1xf32>
    %91 = vector.broadcast %90 : vector<64x1xf32> to vector<64x64xf32>
    %92 = arith.mulf %83, %91 : vector<64x64xf32>
    %cst_18 = arith.constant dense<0.000000e+00> : vector<64x8xf32>
    %93 = tpu.matmul %92, %74, %cst_18 {dimension_numbers = #tpu.dot_dimension_numbers<[1], [0], [0], [1], [0, 0, 1, 1], [], []>} : vector<64x64xf32>, vector<64x8xf32>, vector<64x8xf32> -> vector<64x8xf32>
    %94 = vector.extract_strided_slice %93 {offsets = [0, 0], sizes = [16, 8], strides = [1, 1]} : vector<64x8xf32> to vector<16x8xf32>
    %95 = vector.extract_strided_slice %93 {offsets = [16, 0], sizes = [16, 8], strides = [1, 1]} : vector<64x8xf32> to vector<16x8xf32>
    %96 = vector.extract_strided_slice %93 {offsets = [32, 0], sizes = [16, 8], strides = [1, 1]} : vector<64x8xf32> to vector<16x8xf32>
    %97 = vector.extract_strided_slice %93 {offsets = [48, 0], sizes = [16, 8], strides = [1, 1]} : vector<64x8xf32> to vector<16x8xf32>
    %98 = tpu.concatenate %94, %95, %96, %97 in 1 : vector<16x8xf32>, vector<16x8xf32>, vector<16x8xf32>, vector<16x8xf32> -> vector<16x32xf32>
    %cst_19 = arith.constant dense<0.000000e+00> : vector<16x32xf32>
    %99 = tpu.matmul %98, %4, %cst_19 {dimension_numbers = #tpu.dot_dimension_numbers<[1], [0], [0], [1], [0, 0, 1, 1], [], []>} : vector<16x32xf32>, vector<32x32xf32>, vector<16x32xf32> -> vector<16x32xf32>
    %100 = vector.broadcast %13 : vector<1x32xf32> to vector<16x32xf32>
    %101 = arith.addf %99, %100 : vector<16x32xf32>
    %102 = arith.addf %101, %63 : vector<16x32xf32>
    %cst_20 = arith.constant dense<0.000000e+00> : vector<16xf32>
    %103 = vector.multi_reduction <add>, %102, %cst_20 [1] : vector<16x32xf32> to vector<16xf32>
    %104 = vector.shape_cast %103 : vector<16xf32> to vector<16x1xf32>
    %cst_21 = arith.constant 3.200000e+01 : f32
    %105 = vector.broadcast %cst_21 : f32 to vector<16x1xf32>
    %106 = arith.divf %104, %105 : vector<16x1xf32>
    %107 = arith.mulf %102, %102 : vector<16x32xf32>
    %cst_22 = arith.constant dense<0.000000e+00> : vector<16xf32>
    %108 = vector.multi_reduction <add>, %107, %cst_22 [1] : vector<16x32xf32> to vector<16xf32>
    %109 = vector.shape_cast %108 : vector<16xf32> to vector<16x1xf32>
    %cst_23 = arith.constant 3.200000e+01 : f32
    %110 = vector.broadcast %cst_23 : f32 to vector<16x1xf32>
    %111 = arith.divf %109, %110 : vector<16x1xf32>
    %112 = arith.mulf %106, %106 : vector<16x1xf32>
    %113 = arith.subf %111, %112 : vector<16x1xf32>
    %114 = vector.broadcast %106 : vector<16x1xf32> to vector<16x32xf32>
    %115 = arith.subf %102, %114 : vector<16x32xf32>
    %cst_24 = arith.constant 9.99999974E-6 : f32
    %116 = vector.broadcast %cst_24 : f32 to vector<16x1xf32>
    %117 = arith.addf %113, %116 : vector<16x1xf32>
    %118 = math.rsqrt %117 : vector<16x1xf32>
    %119 = vector.broadcast %118 : vector<16x1xf32> to vector<16x32xf32>
    %120 = arith.mulf %115, %119 : vector<16x32xf32>
    %121 = vector.broadcast %11 : vector<1x32xf32> to vector<16x32xf32>
    %122 = arith.mulf %120, %121 : vector<16x32xf32>
    %123 = vector.broadcast %12 : vector<1x32xf32> to vector<16x32xf32>
    %124 = arith.addf %122, %123 : vector<16x32xf32>
    %cst_25 = arith.constant dense<0.000000e+00> : vector<16x32xf32>
    %125 = tpu.matmul %124, %5, %cst_25 {dimension_numbers = #tpu.dot_dimension_numbers<[1], [0], [0], [1], [0, 0, 1, 1], [], []>} : vector<16x32xf32>, vector<32x32xf32>, vector<16x32xf32> -> vector<16x32xf32>
    %126 = vector.broadcast %14 : vector<1x32xf32> to vector<16x32xf32>
    %127 = arith.addf %125, %126 : vector<16x32xf32>
    %cst_26 = arith.constant 0.000000e+00 : f32
    %128 = vector.broadcast %cst_26 : f32 to vector<16x32xf32>
    %129 = arith.maximumf %127, %128 : vector<16x32xf32>
    %cst_27 = arith.constant dense<0.000000e+00> : vector<16x32xf32>
    %130 = tpu.matmul %129, %6, %cst_27 {dimension_numbers = #tpu.dot_dimension_numbers<[1], [0], [0], [1], [0, 0, 1, 1], [], []>} : vector<16x32xf32>, vector<32x32xf32>, vector<16x32xf32> -> vector<16x32xf32>
    %131 = vector.broadcast %15 : vector<1x32xf32> to vector<16x32xf32>
    %132 = arith.addf %130, %131 : vector<16x32xf32>
    %133 = arith.addf %132, %124 : vector<16x32xf32>
    %c0_28 = arith.constant 0 : index
    %c0_29 = arith.constant 0 : index
    %134 = vector.load %arg2[%c0_28, %c0_29] : memref<16x32xf32, #tpu.memory_space<vmem>>, vector<16x32xf32>
    tpu.vector_store %arg2[%c0_28, %c0_29], %133 {strides = array<i32>} : memref<16x32xf32, #tpu.memory_space<vmem>>, vector<16x32xf32>,
    return
  }
}

</mosaic_0001>

<llo_original>
// kernel: encoder_block_pallas.1
$region0: #{encoder_block_pallas.1}
  #allocation0 [shape = 'u32[]', space=smem, size = 0x4, offset = 0x4, fixed_abs, tag = 'smem constant byte address 0x4 - core index']
  #allocation1 [shape = 'u32[144,128]{1,0:T(1,128)}', space=vmem, size = 0x12000, scoped, tag = 'internal scratch']
  %s0 = inlined_call_operand.vmem [shape: s32[16,5], index: 0, kind: input, shape index: {}]
  %s1 = inlined_call_operand.hbm [shape: f32[280,96], index: 1, kind: input, shape index: {}]
  %s2 = inlined_call_operand.vmem [shape: f32[16,32], index: 2, kind: output, shape index: {}]
  %s3 = sld [smem:[#allocation0]]
  $region22: #{encoder_block_pallas.1} parent=0
    _
  %s5 = ssub.s32 1, %s3
  %s6 = scalar_select 0, %s5, %s3
  $region1: #{encoder_block_pallas.1} parent=0
    #allocation2 [shape = 'u8[143360]{0}', space=vmem, size = 0x23000, scoped, tag = 'input window, operand 1, single buffered']
    #allocation3 [shape = 's32[1]{0}', space=sflag, size = 0x4, scoped, tag = 'scoped memory for encoder_block_pallas.1']
    %7 = vsyncpa [#allocation3], 0
    // Predicated region
    $region2: #{encoder_block_pallas.1} parent=1 // pred_check
      _
    $region3: #{encoder_block_pallas.1} parent=1 // pred_check_branch
      %9 = sbr.rel (0) target = $region5
    $region4: #{encoder_block_pallas.1} parent=1 // pred_region
      _
    $region5: #{encoder_block_pallas.1} parent=1 // pred_fallthru
      _
    // Predicated region
    $region6: #{encoder_block_pallas.1} parent=1 // pred_check
      _
    $region7: #{encoder_block_pallas.1} parent=1 // pred_check_branch
      %11 = sbr.rel (0) target = $region9
    $region8: #{encoder_block_pallas.1} parent=1 // pred_region
      %s13 = ssub.s32 4480, 4480
      %14 = vsyncadd [#allocation3], %s13
      %s15 = sshll.u32 [#allocation2], 4
      %s16 = int_to_ptr.vmem [resolvable:$true] %s15
      %21 = dma.hbm_to_vmem [thread:$0]  %s1, 4480, %s16, [#allocation3], 128, 128, 8
    $region9: #{encoder_block_pallas.1} parent=1 // pred_fallthru
      _
    // Predicated region
    $region10: #{encoder_block_pallas.1} parent=1 // pred_check
      _
    $region11: #{encoder_block_pallas.1} parent=1 // pred_check_branch
      %23 = sbr.rel (0) target = $region13
    $region12: #{encoder_block_pallas.1} parent=1 // pred_region
      %24 = dma.done [#allocation3], 4480
    $region13: #{encoder_block_pallas.1} parent=1 // pred_fallthru
      _
    %v25 = vld [vmem:[#allocation2] sm:$0xff]
    %v26 = vld [vmem:[#allocation2 + $0x8] sm:$0xff]
    %v27 = vld [vmem:[#allocation2 + $0x10] sm:$0xff]
    %v28 = vld [vmem:[#allocation2 + $0x18] sm:$0xff]
    %v29 = vld [vmem:[#allocation2 + $0x20] sm:$0xff]
    %v30 = vld [vmem:[#allocation2 + $0x28] sm:$0xff]
    %v31 = vld [vmem:[#allocation2 + $0x30] sm:$0xff]
    %v32 = vld [vmem:[#allocation2 + $0x38] sm:$0xff]
    %v33 = vld [vmem:[#allocation2 + $0x40] sm:$0xff]
    %v34 = vld [vmem:[#allocation2 + $0x48] sm:$0xff]
    %v35 = vld [vmem:[#allocation2 + $0x50] sm:$0xff]
    %v36 = vld [vmem:[#allocation2 + $0x58] sm:$0xff]
    %v37 = vld [vmem:[#allocation2 + $0x60] sm:$0xff]
    %v38 = vld [vmem:[#allocation2 + $0x68] sm:$0xff]
    %v39 = vld [vmem:[#allocation2 + $0x70] sm:$0xff]
    %v40 = vld [vmem:[#allocation2 + $0x78] sm:$0xff]
    %v41 = vld [vmem:[#allocation2 + $0x80] sm:$0xff]
    %v42 = vld [vmem:[#allocation2 + $0x88] sm:$0xff]
    %v43 = vld [vmem:[#allocation2 + $0x90] sm:$0xff]
    %v44 = vld [vmem:[#allocation2 + $0x98] sm:$0xff]
    %v45 = vld [vmem:[#allocation2 + $0xa0] sm:$0xff]
    %v46 = vld [vmem:[#allocation2 + $0xa8] sm:$0xff]
    %v47 = vld [vmem:[#allocation2 + $0xb0] sm:$0xff]
    %v48 = vld [vmem:[#allocation2 + $0xb8] sm:$0xff]
    %v49 = vld [vmem:[#allocation2 + $0xc0] sm:$0xff]
    %v50 = vld [vmem:[#allocation2 + $0xc8] sm:$0xff]
    %v51 = vld [vmem:[#allocation2 + $0xd0] sm:$0xff]
    %v52 = vld [vmem:[#allocation2 + $0xd8] sm:$0xff]
    %v53 = vld [vmem:[#allocation2 + $0xe0] sm:$0xff]
    %v54 = vld [vmem:[#allocation2 + $0xe8] sm:$0xff]
    %v55 = vld [vmem:[#allocation2 + $0xf0] sm:$0xff]
    %v56 = vld [vmem:[#allocation2 + $0xf8] sm:$0xff]
    %v57 = vld [vmem:[#allocation2 + $0x100] sm:$0xff]
    %v58 = vld [vmem:[#allocation2 + $0x108] sm:$0xff]
    %v59 = vld [vmem:[#allocation2 + $0x110] sm:$0xff]
    %v60 = vld [vmem:[%s0] sm:$0xff]
    %v61 = vld [vmem:[%s0 + $0x8] sm:$0xff]
    %v62 = vlaneseq
    %v63 = vand.u32 %v62, 127
    %v64 = vadd.s32 %v63, 128
    %65 = vset.pattern.permute.xlu0 0
    %66 = vperm.xlu0 %65, %v60
    %v67 = vpop.permute.xlu0 %66
    %68 = vset.pattern.permute.xlu0 0
    %69 = vperm.xlu0 %68, %v61
    %v70 = vpop.permute.xlu0 %69
    %vm71 = vcmp.eq.s32.totalorder %v63, %v67
    %vm72 = vcmp.eq.s32.totalorder %v64, %v67
    %vm73 = vcmp.eq.s32.totalorder %v63, %v70
    %vm74 = vcmp.eq.s32.totalorder %v64, %v70
    %75 = vset.pattern.permute.xlu0 1
    %76 = vperm.xlu0 %75, %v60
    %v77 = vpop.permute.xlu0 %76
    %78 = vset.pattern.permute.xlu0 1
    %79 = vperm.xlu0 %78, %v61
    %v80 = vpop.permute.xlu0 %79
    %vm81 = vcmp.eq.s32.totalorder %v63, %v77
    %vm82 = vcmp.eq.s32.totalorder %v64, %v77
    %vm83 = vcmp.eq.s32.totalorder %v63, %v80
    %vm84 = vcmp.eq.s32.totalorder %v64, %v80
    %vm85 = vmor %vm71, %vm81
    %vm86 = vmor %vm72, %vm82
    %vm87 = vmor %vm73, %vm83
    %vm88 = vmor %vm74, %vm84
    %89 = vset.pattern.permute.xlu0 2
    %90 = vperm.xlu0 %89, %v60
    %v91 = vpop.permute.xlu0 %90
    %92 = vset.pattern.permute.xlu0 2
    %93 = vperm.xlu0 %92, %v61
    %v94 = vpop.permute.xlu0 %93
    %vm95 = vcmp.eq.s32.totalorder %v63, %v91
    %vm96 = vcmp.eq.s32.totalorder %v64, %v91
    %vm97 = vcmp.eq.s32.totalorder %v63, %v94
    %vm98 = vcmp.eq.s32.totalorder %v64, %v94
    %vm99 = vmor %vm85, %vm95
    %vm100 = vmor %vm86, %vm96
    %vm101 = vmor %vm87, %vm97
    %vm102 = vmor %vm88, %vm98
    %103 = vset.pattern.permute.xlu0 3
    %104 = vperm.xlu0 %103, %v60
    %v105 = vpop.permute.xlu0 %104
    %106 = vset.pattern.permute.xlu0 3
    %107 = vperm.xlu0 %106, %v61
    %v108 = vpop.permute.xlu0 %107
    %vm109 = vcmp.eq.s32.totalorder %v63, %v105
    %vm110 = vcmp.eq.s32.totalorder %v64, %v105
    %vm111 = vcmp.eq.s32.totalorder %v63, %v108
    %vm112 = vcmp.eq.s32.totalorder %v64, %v108
    %vm113 = vmor %vm99, %vm109
    %vm114 = vmor %vm100, %vm110
    %vm115 = vmor %vm101, %vm111
    %vm116 = vmor %vm102, %vm112
    %117 = vset.pattern.permute.xlu0 4
    %118 = vperm.xlu0 %117, %v60
    %v119 = vpop.permute.xlu0 %118
    %120 = vset.pattern.permute.xlu0 4
    %121 = vperm.xlu0 %120, %v61
    %v122 = vpop.permute.xlu0 %121
    %vm123 = vcmp.eq.s32.totalorder %v63, %v119
    %vm124 = vcmp.eq.s32.totalorder %v64, %v119
    %vm125 = vcmp.eq.s32.totalorder %v63, %v122
    %vm126 = vcmp.eq.s32.totalorder %v64, %v122
    %vm127 = vmor %vm113, %vm123
    %vm128 = vmor %vm114, %vm124
    %vm129 = vmor %vm115, %vm125
    %vm130 = vmor %vm116, %vm126
    %v131 = vsel %vm127, 1, 0
    %v132 = vsel %vm128, 1, 0
    %v133 = vsel %vm129, 1, 0
    %v134 = vsel %vm130, 1, 0
    %v135 = vcvt.s32.f32 %v131
    %v136 = vcvt.s32.f32 %v132
    %v137 = vcvt.s32.f32 %v133
    %v138 = vcvt.s32.f32 %v134
    %vm139 = vcmask 130048
    %v141 = vsel %vm139, %v136, 0
    %v144 = vsel %vm139, %v138, 0
    %146 = vmatprep.subr.mxu0 0.0
    %147 = vmatpush1.msra.mxu0 %v40
    %148 = vmatprep.subr.mxu0 0.0
    %149 = vmatpush1.msra.mxu0 %v39
    %150 = vmatprep.subr.mxu0 0.0
    %151 = vmatpush1.msra.mxu0 %v38
    %152 = vmatprep.subr.mxu0 0.0
    %153 = vmatpush1.msra.mxu0 %v37
    %154 = vmatprep.subr.mxu0 0.0
    %155 = vmatpush1.msra.mxu0 %v36
    %156 = vmatprep.subr.mxu0 0.0
    %157 = vmatpush1.msra.mxu0 %v35
    %158 = vmatprep.subr.mxu0 0.0
    %159 = vmatpush1.msra.mxu0 %v34
    %160 = vmatprep.subr.mxu0 0.0
    %161 = vmatpush1.msra.mxu0 %v33
    %162 = vmatprep.subr.mxu0 0.0
    %163 = vmatpush1.msra.mxu0 %v32
    %164 = vmatprep.subr.mxu0 0.0
    %165 = vmatpush1.msra.mxu0 %v31
    %166 = vmatprep.subr.mxu0 0.0
    %167 = vmatpush1.msra.mxu0 %v30
    %168 = vmatprep.subr.mxu0 0.0
    %169 = vmatpush1.msra.mxu0 %v29
    %170 = vmatprep.subr.mxu0 0.0
    %171 = vmatpush1.msra.mxu0 %v28
    %172 = vmatprep.subr.mxu0 0.0
    %173 = vmatpush1.msra.mxu0 %v27
    %174 = vmatprep.subr.mxu0 0.0
    %175 = vmatpush1.msra.mxu0 %v26
    %176 = vmatprep.subr.mxu0 0.0
    %177 = vmatpush1.msra.mxu0 %v25
    %178 = vmatprep.subr.mxu0 0.0
    %179 = vmatpush2.msra.mxu0 0.0
    %180 = vmatprep.subr.mxu0 0.0
    %181 = vmatpush2.msra.mxu0 0.0
    %182 = vmatprep.subr.mxu0 0.0
    %183 = vmatpush2.msra.mxu0 0.0
    %184 = vmatprep.subr.mxu0 0.0
    %185 = vmatpush2.msra.mxu0 0.0
    %186 = vmatprep.subr.mxu0 0.0
    %187 = vmatpush2.msra.mxu0 0.0
    %188 = vmatprep.subr.mxu0 0.0
    %189 = vmatpush2.msra.mxu0 0.0
    %190 = vmatprep.subr.mxu0 0.0
    %191 = vmatpush2.msra.mxu0 0.0
    %192 = vmatprep.subr.mxu0 0.0
    %193 = vmatpush2.msra.mxu0 0.0
    %194 = vmatprep.subr.mxu0 0.0
    %195 = vmatpush2.msra.mxu0 0.0
    %196 = vmatprep.subr.mxu0 0.0
    %197 = vmatpush2.msra.mxu0 0.0
    %198 = vmatprep.subr.mxu0 0.0
    %199 = vmatpush2.msra.mxu0 0.0
    %200 = vmatprep.subr.mxu0 0.0
    %201 = vmatpush2.msra.mxu0 0.0
    %202 = vmatprep.subr.mxu0 0.0
    %203 = vmatpush2.msra.mxu0 0.0
    %204 = vmatprep.subr.mxu0 0.0
    %205 = vmatpush2.msra.mxu0 0.0
    %206 = vmatprep.subr.mxu0 0.0
    %207 = vmatpush2.msra.mxu0 %v42
    %208 = vmatprep.subr.mxu0 0.0
    %209 = vmatpush2.msra.mxu0 %v41
    %210 = vmatprep.mubr.f32.mxu0 %v141
    %211 = vmatmul.mubr.f32.gmra.mxu0 %v135
    %v212 = vpop.f32.mrf.mxu0
    %v213 = vadd.f32 0.0, %v212
    %v214 = vpop.f32.mrf.mxu0
    %215 = vmatprep.mubr.f32.mxu0 %v144
    %216 = vmatmul.mubr.f32.gmra.mxu0 %v137
    %v217 = vpop.f32.mrf.mxu0
    %v218 = vadd.f32 0.0, %v217
    %v219 = vpop.f32.mrf.mxu0
    %220 = vdwg.mxu0
    %vm221 = vcmask 261120
    %v222 = vsel %vm221, %v213, 0.0
    %223 = vadd.xlane.f32.xlu0 %v222
    %v224 = vpop.xlane.xlu0 %223
    %v225 = vsel %vm221, %v218, 0.0
    %226 = vadd.xlane.f32.xlu0 %v225
    %v227 = vpop.xlane.xlu0 %226
    %v228 = vrcp.pop 32.0
    %v229 = vmul.f32 %v224, %v228
    %v230 = vmul.f32 %v227, %v228
    %v231 = vmul.f32 %v213, %v213
    %v232 = vmul.f32 %v218, %v218
    %v233 = vsel %vm221, %v231, 0.0
    %234 = vadd.xlane.f32.xlu0 %v233
    %v235 = vpop.xlane.xlu0 %234
    %v236 = vsel %vm221, %v232, 0.0
    %237 = vadd.xlane.f32.xlu0 %v236
    %v238 = vpop.xlane.xlu0 %237
    %v239 = vmul.f32 %v235, %v228
    %v240 = vmul.f32 %v238, %v228
    %v241 = vmul.f32 %v229, %v229
    %v242 = vmul.f32 %v230, %v230
    %v243 = vsub.f32 %v239, %v241
    %v244 = vsub.f32 %v240, %v242
    %v245 = vsub.f32 %v213, %v229
    %v246 = vsub.f32 %v218, %v230
    %v247 = vadd.f32 %v243, 1e-05
    %v248 = vadd.f32 %v244, 1e-05
    %v249 = vrsqrt.pop %v247
    %v250 = vrsqrt.pop %v248
    %v251 = vmul.f32 %v245, %v249
    %v252 = vmul.f32 %v246, %v250
    %v253 = vlaneseq
    %v254 = vshrl.u32 %v253, 7
    %v255 = vsub.s32 1, %v254
    %v256 = vrot.slane %v51, %v255
    %v257 = vmul.f32 %v251, %v256
    %v258 = vmul.f32 %v252, %v256
    %v259 = vlaneseq
    %v260 = vshrl.u32 %v259, 7
    %v261 = vsub.s32 2, %v260
    %v262 = vrot.slane %v51, %v261
    %v263 = vadd.f32 %v257, %v262
    %v264 = vadd.f32 %v258, %v262
    %v265 = vlaneseq
    %v266 = vshrl.u32 %v265, 7
    %v267 = vsub.s32 0, %v266
    %v268 = vrot.slane %v51, %v267
    %v270 = vsel %vm221, %v263, 0
    %v273 = vsel %vm221, %v264, 0
    %275 = vmatprep.subr.mxu0 0.0
    %276 = vmatpush1.msra.mxu0 0.0
    %277 = vmatprep.subr.mxu0 0.0
    %278 = vmatpush1.msra.mxu0 0.0
    %279 = vmatprep.subr.mxu0 0.0
    %280 = vmatpush1.msra.mxu0 0.0
    %281 = vmatprep.subr.mxu0 0.0
    %282 = vmatpush1.msra.mxu0 0.0
    %283 = vmatprep.subr.mxu0 0.0
    %284 = vmatpush1.msra.mxu0 0.0
    %285 = vmatprep.subr.mxu0 0.0
    %286 = vmatpush1.msra.mxu0 0.0
    %287 = vmatprep.subr.mxu0 0.0
    %288 = vmatpush1.msra.mxu0 0.0
    %289 = vmatprep.subr.mxu0 0.0
    %290 = vmatpush1.msra.mxu0 0.0
    %291 = vmatprep.subr.mxu0 0.0
    %292 = vmatpush1.msra.mxu0 0.0
    %293 = vmatprep.subr.mxu0 0.0
    %294 = vmatpush1.msra.mxu0 0.0
    %295 = vmatprep.subr.mxu0 0.0
    %296 = vmatpush1.msra.mxu0 0.0
    %297 = vmatprep.subr.mxu0 0.0
    %298 = vmatpush1.msra.mxu0 0.0
    %299 = vmatprep.subr.mxu0 0.0
    %300 = vmatpush1.msra.mxu0 %v46
    %301 = vmatprep.subr.mxu0 0.0
    %302 = vmatpush1.msra.mxu0 %v45
    %303 = vmatprep.subr.mxu0 0.0
    %304 = vmatpush1.msra.mxu0 %v44
    %305 = vmatprep.subr.mxu0 0.0
    %306 = vmatpush1.msra.mxu0 %v43
    %307 = vmatprep.subr.mxu0 0.0
    %308 = vmatpush2.msra.mxu0 0.0
    %309 = vmatprep.subr.mxu0 0.0
    %310 = vmatpush2.msra.mxu0 0.0
    %311 = vmatprep.subr.mxu0 0.0
    %312 = vmatpush2.msra.mxu0 0.0
    %313 = vmatprep.subr.mxu0 0.0
    %314 = vmatpush2.msra.mxu0 0.0
    %315 = vmatprep.subr.mxu0 0.0
    %316 = vmatpush2.msra.mxu0 0.0
    %317 = vmatprep.subr.mxu0 0.0
    %318 = vmatpush2.msra.mxu0 0.0
    %319 = vmatprep.subr.mxu0 0.0
    %320 = vmatpush2.msra.mxu0 0.0
    %321 = vmatprep.subr.mxu0 0.0
    %322 = vmatpush2.msra.mxu0 0.0
    %323 = vmatprep.subr.mxu0 0.0
    %324 = vmatpush2.msra.mxu0 0.0
    %325 = vmatprep.subr.mxu0 0.0
    %326 = vmatpush2.msra.mxu0 0.0
    %327 = vmatprep.subr.mxu0 0.0
    %328 = vmatpush2.msra.mxu0 0.0
    %329 = vmatprep.subr.mxu0 0.0
    %330 = vmatpush2.msra.mxu0 0.0
    %331 = vmatprep.subr.mxu0 0.0
    %332 = vmatpush2.msra.mxu0 0.0
    %333 = vmatprep.subr.mxu0 0.0
    %334 = vmatpush2.msra.mxu0 0.0
    %335 = vmatprep.subr.mxu0 0.0
    %336 = vmatpush2.msra.mxu0 0.0
    %337 = vmatprep.subr.mxu0 0.0
    %338 = vmatpush2.msra.mxu0 0.0
    %339 = vmatprep.mubr.f32.mxu0 0.0
    %340 = vmatmul.mubr.f32.gmra.mxu0 %v270
    %v341 = vpop.f32.mrf.mxu0
    %v342 = vadd.f32 %v268, %v341
    %v343 = vpop.f32.mrf.mxu0
    %344 = vmatprep.mubr.f32.mxu0 0.0
    %345 = vmatmul.mubr.f32.gmra.mxu0 %v273
    %v346 = vpop.f32.mrf.mxu0
    %v347 = vadd.f32 %v268, %v346
    %v348 = vpop.f32.mrf.mxu0
    %349 = vdwg.mxu0
    %352 = vrot.lane.b32.xlu0 %v342, 104
    %v353 = vpop.permute.xlu0 %352
    %354 = vrot.lane.b32.xlu0 %v347, 104
    %v355 = vpop.permute.xlu0 %354
    %356 = vrot.lane.b32.xlu0 %v342, 80
    %v357 = vpop.permute.xlu0 %356
    %358 = vrot.lane.b32.xlu0 %v347, 80
    %v359 = vpop.permute.xlu0 %358
    %360 = vrot.lane.b32.xlu0 %v342, 56
    %v361 = vpop.permute.xlu0 %360
    %362 = vrot.lane.b32.xlu0 %v347, 56
    %v363 = vpop.permute.xlu0 %362
    %364 = vrot.lane.b32.xlu0 %v342, 120
    %v365 = vpop.permute.xlu0 %364
    %366 = vrot.lane.b32.xlu0 %v347, 120
    %v367 = vpop.permute.xlu0 %366
    %368 = vrot.lane.b32.xlu0 %v353, 120
    %v369 = vpop.permute.xlu0 %368
    %370 = vrot.lane.b32.xlu0 %v355, 120
    %v371 = vpop.permute.xlu0 %370
    %372 = vrot.lane.b32.xlu0 %v357, 120
    %v373 = vpop.permute.xlu0 %372
    %374 = vrot.lane.b32.xlu0 %v359, 120
    %v375 = vpop.permute.xlu0 %374
    %376 = vrot.lane.b32.xlu0 %v361, 120
    %v377 = vpop.permute.xlu0 %376
    %378 = vrot.lane.b32.xlu0 %v363, 120
    %v379 = vpop.permute.xlu0 %378
    %vm380 = vcmask 64512
    %v381 = vsel %vm380, %v342, 0
    %v383 = vsel %vm380, %v347, 0
    %v385 = vsel %vm380, %v353, 0
    %v387 = vsel %vm380, %v355, 0
    %v389 = vsel %vm380, %v357, 0
    %v391 = vsel %vm380, %v359, 0
    %v393 = vsel %vm380, %v361, 0
    %v395 = vsel %vm380, %v363, 0
    %v397 = vsel %vm380, %v365, 0
    %v399 = vsel %vm380, %v367, 0
    %v401 = vsel %vm380, %v369, 0
    %v403 = vsel %vm380, %v371, 0
    %v405 = vsel %vm380, %v373, 0
    %v407 = vsel %vm380, %v375, 0
    %v409 = vsel %vm380, %v377, 0
    %v411 = vsel %vm380, %v379, 0
    %413 = vmatprep.subr.mxu0 0.0
    %414 = vmatpush1.xpose.msra.mxu0 0.0
    %415 = vmatprep.subr.mxu0 0.0
    %416 = vmatpush1.xpose.msra.mxu0 0.0
    %417 = vmatprep.subr.mxu0 0.0
    %418 = vmatpush1.xpose.msra.mxu0 0.0
    %419 = vmatprep.subr.mxu0 0.0
    %420 = vmatpush1.xpose.msra.mxu0 0.0
    %421 = vmatprep.subr.mxu0 0.0
    %422 = vmatpush1.xpose.msra.mxu0 0.0
    %423 = vmatprep.subr.mxu0 0.0
    %424 = vmatpush1.xpose.msra.mxu0 0.0
    %425 = vmatprep.subr.mxu0 0.0
    %426 = vmatpush1.xpose.msra.mxu0 0.0
    %427 = vmatprep.subr.mxu0 0.0
    %428 = vmatpush1.xpose.msra.mxu0 0.0
    %429 = vmatprep.subr.mxu0 0.0
    %430 = vmatpush1.xpose.msra.mxu0 %v411
    %431 = vmatprep.subr.mxu0 0.0
    %432 = vmatpush1.xpose.msra.mxu0 %v409
    %433 = vmatprep.subr.mxu0 0.0
    %434 = vmatpush1.xpose.msra.mxu0 %v407
    %435 = vmatprep.subr.mxu0 0.0
    %436 = vmatpush1.xpose.msra.mxu0 %v405
    %437 = vmatprep.subr.mxu0 0.0
    %438 = vmatpush1.xpose.msra.mxu0 %v403
    %439 = vmatprep.subr.mxu0 0.0
    %440 = vmatpush1.xpose.msra.mxu0 %v401
    %441 = vmatprep.subr.mxu0 0.0
    %442 = vmatpush1.xpose.msra.mxu0 %v399
    %443 = vmatprep.subr.mxu0 0.0
    %444 = vmatpush1.xpose.msra.mxu0 %v397
    %445 = vmatprep.subr.mxu0 0.0
    %446 = vmatpush2.xpose.msra.mxu0 0.0
    %447 = vmatprep.subr.mxu0 0.0
    %448 = vmatpush2.xpose.msra.mxu0 0.0
    %449 = vmatprep.subr.mxu0 0.0
    %450 = vmatpush2.xpose.msra.mxu0 0.0
    %451 = vmatprep.subr.mxu0 0.0
    %452 = vmatpush2.xpose.msra.mxu0 0.0
    %453 = vmatprep.subr.mxu0 0.0
    %454 = vmatpush2.xpose.msra.mxu0 0.0
    %455 = vmatprep.subr.mxu0 0.0
    %456 = vmatpush2.xpose.msra.mxu0 0.0
    %457 = vmatprep.subr.mxu0 0.0
    %458 = vmatpush2.xpose.msra.mxu0 0.0
    %459 = vmatprep.subr.mxu0 0.0
    %460 = vmatpush2.xpose.msra.mxu0 0.0
    %461 = vmatprep.subr.mxu0 0.0
    %462 = vmatpush2.xpose.msra.mxu0 0.0
    %463 = vmatprep.subr.mxu0 0.0
    %464 = vmatpush2.xpose.msra.mxu0 0.0
    %465 = vmatprep.subr.mxu0 0.0
    %466 = vmatpush2.xpose.msra.mxu0 0.0
    %467 = vmatprep.subr.mxu0 0.0
    %468 = vmatpush2.xpose.msra.mxu0 0.0
    %469 = vmatprep.subr.mxu0 0.0
    %470 = vmatpush2.xpose.msra.mxu0 0.0
    %471 = vmatprep.subr.mxu0 0.0
    %472 = vmatpush2.xpose.msra.mxu0 0.0
    %473 = vmatprep.subr.mxu0 0.0
    %474 = vmatpush2.xpose.msra.mxu0 0.0
    %475 = vmatprep.subr.mxu0 0.0
    %476 = vmatpush2.xpose.msra.mxu0 0.0
    %477 = vmatprep.mubr.f32.mxu0 0.0
    %478 = vmatmul.mubr.f32.gmra.mxu0 %v381
    %v479 = vpop.f32.mrf.mxu0
    %v480 = vadd.f32 0.0, %v479
    %v481 = vpop.f32.mrf.mxu0
    %482 = vmatprep.mubr.f32.mxu0 0.0
    %483 = vmatmul.mubr.f32.gmra.mxu0 %v383
    %v484 = vpop.f32.mrf.mxu0
    %v485 = vadd.f32 0.0, %v484
    %v486 = vpop.f32.mrf.mxu0
    %487 = vmatprep.mubr.f32.mxu0 0.0
    %488 = vmatmul.mubr.f32.gmra.mxu0 %v385
    %v489 = vpop.f32.mrf.mxu0
    %v490 = vadd.f32 0.0, %v489
    %v491 = vpop.f32.mrf.mxu0
    %492 = vmatprep.mubr.f32.mxu0 0.0
    %493 = vmatmul.mubr.f32.gmra.mxu0 %v387
    %v494 = vpop.f32.mrf.mxu0
    %v495 = vadd.f32 0.0, %v494
    %v496 = vpop.f32.mrf.mxu0
    %497 = vmatprep.mubr.f32.mxu0 0.0
    %498 = vmatmul.mubr.f32.gmra.mxu0 %v389
    %v499 = vpop.f32.mrf.mxu0
    %v500 = vadd.f32 0.0, %v499
    %v501 = vpop.f32.mrf.mxu0
    %502 = vmatprep.mubr.f32.mxu0 0.0
    %503 = vmatmul.mubr.f32.gmra.mxu0 %v391
    %v504 = vpop.f32.mrf.mxu0
    %v505 = vadd.f32 0.0, %v504
    %v506 = vpop.f32.mrf.mxu0
    %507 = vmatprep.mubr.f32.mxu0 0.0
    %508 = vmatmul.mubr.f32.gmra.mxu0 %v393
    %v509 = vpop.f32.mrf.mxu0
    %v510 = vadd.f32 0.0, %v509
    %v511 = vpop.f32.mrf.mxu0
    %512 = vmatprep.mubr.f32.mxu0 0.0
    %513 = vmatmul.mubr.f32.gmra.mxu0 %v395
    %v514 = vpop.f32.mrf.mxu0
    %v515 = vadd.f32 0.0, %v514
    %v516 = vpop.f32.mrf.mxu0
    %517 = vdwg.mxu0
    %v518 = vmul.f32 %v480, 0.35355338
    %v519 = vmul.f32 %v485, 0.35355338
    %v520 = vmul.f32 %v490, 0.35355338
    %v521 = vmul.f32 %v495, 0.35355338
    %v522 = vmul.f32 %v500, 0.35355338
    %v523 = vmul.f32 %v505, 0.35355338
    %v524 = vmul.f32 %v510, 0.35355338
    %v525 = vmul.f32 %v515, 0.35355338
    %v526 = vadd.f32 %v518, %v52
    %v527 = vadd.f32 %v519, %v53
    %v528 = vadd.f32 %v520, %v54
    %v529 = vadd.f32 %v521, %v55
    %v530 = vadd.f32 %v522, %v56
    %v531 = vadd.f32 %v523, %v57
    %v532 = vadd.f32 %v524, %v58
    %v533 = vadd.f32 %v525, %v59
    %vm534 = vcmask 523264
    %v535 = vsel %vm534, %v526, -inf
    %536 = vmax.xlane.f32.xlu0 %v535
    %v537 = vpop.xlane.xlu0 %536
    %v538 = vsel %vm534, %v527, -inf
    %539 = vmax.xlane.f32.xlu0 %v538
    %v540 = vpop.xlane.xlu0 %539
    %v541 = vsel %vm534, %v528, -inf
    %542 = vmax.xlane.f32.xlu0 %v541
    %v543 = vpop.xlane.xlu0 %542
    %v544 = vsel %vm534, %v529, -inf
    %545 = vmax.xlane.f32.xlu0 %v544
    %v546 = vpop.xlane.xlu0 %545
    %v547 = vsel %vm534, %v530, -inf
    %548 = vmax.xlane.f32.xlu0 %v547
    %v549 = vpop.xlane.xlu0 %548
    %v550 = vsel %vm534, %v531, -inf
    %551 = vmax.xlane.f32.xlu0 %v550
    %v552 = vpop.xlane.xlu0 %551
    %v553 = vsel %vm534, %v532, -inf
    %554 = vmax.xlane.f32.xlu0 %v553
    %v555 = vpop.xlane.xlu0 %554
    %v556 = vsel %vm534, %v533, -inf
    %557 = vmax.xlane.f32.xlu0 %v556
    %v558 = vpop.xlane.xlu0 %557
    %v559 = vsub.f32 %v526, %v537
    %v560 = vsub.f32 %v527, %v540
    %v561 = vsub.f32 %v528, %v543
    %v562 = vsub.f32 %v529, %v546
    %v563 = vsub.f32 %v530, %v549
    %v564 = vsub.f32 %v531, %v552
    %v565 = vsub.f32 %v532, %v555
    %v566 = vsub.f32 %v533, %v558
    %v567 = vmul.f32 %v559, 1.442695
    %v568 = vpow.pop %v567
    %v569 = vmul.f32 %v560, 1.442695
    %v570 = vpow.pop %v569
    %v571 = vmul.f32 %v561, 1.442695
    %v572 = vpow.pop %v571
    %v573 = vmul.f32 %v562, 1.442695
    %v574 = vpow.pop %v573
    %v575 = vmul.f32 %v563, 1.442695
    %v576 = vpow.pop %v575
    %v577 = vmul.f32 %v564, 1.442695
    %v578 = vpow.pop %v577
    %v579 = vmul.f32 %v565, 1.442695
    %v580 = vpow.pop %v579
    %v581 = vmul.f32 %v566, 1.442695
    %v582 = vpow.pop %v581
    %v583 = vsel %vm534, %v568, 0.0
    %584 = vadd.xlane.f32.xlu0 %v583
    %v585 = vpop.xlane.xlu0 %584
    %v586 = vsel %vm534, %v570, 0.0
    %587 = vadd.xlane.f32.xlu0 %v586
    %v588 = vpop.xlane.xlu0 %587
    %v589 = vsel %vm534, %v572, 0.0
    %590 = vadd.xlane.f32.xlu0 %v589
    %v591 = vpop.xlane.xlu0 %590
    %v592 = vsel %vm534, %v574, 0.0
    %593 = vadd.xlane.f32.xlu0 %v592
    %v594 = vpop.xlane.xlu0 %593
    %v595 = vsel %vm534, %v576, 0.0
    %596 = vadd.xlane.f32.xlu0 %v595
    %v597 = vpop.xlane.xlu0 %596
    %v598 = vsel %vm534, %v578, 0.0
    %599 = vadd.xlane.f32.xlu0 %v598
    %v600 = vpop.xlane.xlu0 %599
    %v601 = vsel %vm534, %v580, 0.0
    %602 = vadd.xlane.f32.xlu0 %v601
    %v603 = vpop.xlane.xlu0 %602
    %v604 = vsel %vm534, %v582, 0.0
    %605 = vadd.xlane.f32.xlu0 %v604
    %v606 = vpop.xlane.xlu0 %605
    %v607 = vrcp.pop %v585
    %v608 = vrcp.pop %v588
    %v609 = vrcp.pop %v591
    %v610 = vrcp.pop %v594
    %v611 = vrcp.pop %v597
    %v612 = vrcp.pop %v600
    %v613 = vrcp.pop %v603
    %v614 = vrcp.pop %v606
    %v615 = vmul.f32 %v585, %v607
    %v616 = vmul.f32 %v588, %v608
    %v617 = vmul.f32 %v591, %v609
    %v618 = vmul.f32 %v594, %v610
    %v619 = vmul.f32 %v597, %v611
    %v620 = vmul.f32 %v600, %v612
    %v621 = vmul.f32 %v603, %v613
    %v622 = vmul.f32 %v606, %v614
    %v623 = vsub.f32 2.0, %v615
    %v624 = vsub.f32 2.0, %v616
    %v625 = vsub.f32 2.0, %v617
    %v626 = vsub.f32 2.0, %v618
    %v627 = vsub.f32 2.0, %v619
    %v628 = vsub.f32 2.0, %v620
    %v629 = vsub.f32 2.0, %v621
    %v630 = vsub.f32 2.0, %v622
    %v631 = vmul.f32 %v607, %v623
    %v632 = vmul.f32 %v608, %v624
    %v633 = vmul.f32 %v609, %v625
    %v634 = vmul.f32 %v610, %v626
    %v635 = vmul.f32 %v611, %v627
    %v636 = vmul.f32 %v612, %v628
    %v637 = vmul.f32 %v613, %v629
    %v638 = vmul.f32 %v614, %v630
    %v639 = vmul.f32 %v568, %v631
    %v640 = vmul.f32 %v570, %v632
    %v641 = vmul.f32 %v572, %v633
    %v642 = vmul.f32 %v574, %v634
    %v643 = vmul.f32 %v576, %v635
    %v644 = vmul.f32 %v578, %v636
    %v645 = vmul.f32 %v580, %v637
    %v646 = vmul.f32 %v582, %v638
    %647 = vrot.lane.b32.xlu0 %v342, 112
    %v648 = vpop.permute.xlu0 %647
    %649 = vrot.lane.b32.xlu0 %v347, 112
    %v650 = vpop.permute.xlu0 %649
    %651 = vrot.lane.b32.xlu0 %v353, 112
    %v652 = vpop.permute.xlu0 %651
    %653 = vrot.lane.b32.xlu0 %v355, 112
    %v654 = vpop.permute.xlu0 %653
    %655 = vrot.lane.b32.xlu0 %v357, 112
    %v656 = vpop.permute.xlu0 %655
    %657 = vrot.lane.b32.xlu0 %v359, 112
    %v658 = vpop.permute.xlu0 %657
    %659 = vrot.lane.b32.xlu0 %v361, 112
    %v660 = vpop.permute.xlu0 %659
    %661 = vrot.lane.b32.xlu0 %v363, 112
    %v662 = vpop.permute.xlu0 %661
    %v672 = vsel %vm534, %v639, 0
    %v675 = vsel %vm534, %v640, 0
    %v678 = vsel %vm534, %v641, 0
    %v681 = vsel %vm534, %v642, 0
    %v684 = vsel %vm534, %v643, 0
    %v687 = vsel %vm534, %v644, 0
    %v690 = vsel %vm534, %v645, 0
    %v693 = vsel %vm534, %v646, 0
    %695 = vmatprep.subr.mxu0 0.0
    %696 = vmatpush1.msra.mxu0 0.0
    %697 = vmatprep.subr.mxu0 0.0
    %698 = vmatpush1.msra.mxu0 0.0
    %699 = vmatprep.subr.mxu0 0.0
    %700 = vmatpush1.msra.mxu0 0.0
    %701 = vmatprep.subr.mxu0 0.0
    %702 = vmatpush1.msra.mxu0 0.0
    %703 = vmatprep.subr.mxu0 0.0
    %704 = vmatpush1.msra.mxu0 0.0
    %705 = vmatprep.subr.mxu0 0.0
    %706 = vmatpush1.msra.mxu0 0.0
    %707 = vmatprep.subr.mxu0 0.0
    %708 = vmatpush1.msra.mxu0 0.0
    %709 = vmatprep.subr.mxu0 0.0
    %710 = vmatpush1.msra.mxu0 0.0
    %711 = vmatprep.subr.mxu0 0.0
    %712 = vmatpush1.msra.mxu0 %v662
    %713 = vmatprep.subr.mxu0 0.0
    %714 = vmatpush1.msra.mxu0 %v660
    %715 = vmatprep.subr.mxu0 0.0
    %716 = vmatpush1.msra.mxu0 %v658
    %717 = vmatprep.subr.mxu0 0.0
    %718 = vmatpush1.msra.mxu0 %v656
    %719 = vmatprep.subr.mxu0 0.0
    %720 = vmatpush1.msra.mxu0 %v654
    %721 = vmatprep.subr.mxu0 0.0
    %722 = vmatpush1.msra.mxu0 %v652
    %723 = vmatprep.subr.mxu0 0.0
    %724 = vmatpush1.msra.mxu0 %v650
    %725 = vmatprep.subr.mxu0 0.0
    %726 = vmatpush1.msra.mxu0 %v648
    %727 = vmatprep.subr.mxu0 0.0
    %728 = vmatpush2.msra.mxu0 0.0
    %729 = vmatprep.subr.mxu0 0.0
    %730 = vmatpush2.msra.mxu0 0.0
    %731 = vmatprep.subr.mxu0 0.0
    %732 = vmatpush2.msra.mxu0 0.0
    %733 = vmatprep.subr.mxu0 0.0
    %734 = vmatpush2.msra.mxu0 0.0
    %735 = vmatprep.subr.mxu0 0.0
    %736 = vmatpush2.msra.mxu0 0.0
    %737 = vmatprep.subr.mxu0 0.0
    %738 = vmatpush2.msra.mxu0 0.0
    %739 = vmatprep.subr.mxu0 0.0
    %740 = vmatpush2.msra.mxu0 0.0
    %741 = vmatprep.subr.mxu0 0.0
    %742 = vmatpush2.msra.mxu0 0.0
    %743 = vmatprep.subr.mxu0 0.0
    %744 = vmatpush2.msra.mxu0 0.0
    %745 = vmatprep.subr.mxu0 0.0
    %746 = vmatpush2.msra.mxu0 0.0
    %747 = vmatprep.subr.mxu0 0.0
    %748 = vmatpush2.msra.mxu0 0.0
    %749 = vmatprep.subr.mxu0 0.0
    %750 = vmatpush2.msra.mxu0 0.0
    %751 = vmatprep.subr.mxu0 0.0
    %752 = vmatpush2.msra.mxu0 0.0
    %753 = vmatprep.subr.mxu0 0.0
    %754 = vmatpush2.msra.mxu0 0.0
    %755 = vmatprep.subr.mxu0 0.0
    %756 = vmatpush2.msra.mxu0 0.0
    %757 = vmatprep.subr.mxu0 0.0
    %758 = vmatpush2.msra.mxu0 0.0
    %759 = vmatprep.mubr.f32.mxu0 0.0
    %760 = vmatmul.mubr.f32.gmra.mxu0 %v672
    %v761 = vpop.f32.mrf.mxu0
    %v762 = vadd.f32 0.0, %v761
    %v763 = vpop.f32.mrf.mxu0
    %764 = vmatprep.mubr.f32.mxu0 0.0
    %765 = vmatmul.mubr.f32.gmra.mxu0 %v675
    %v766 = vpop.f32.mrf.mxu0
    %v767 = vadd.f32 0.0, %v766
    %v768 = vpop.f32.mrf.mxu0
    %769 = vmatprep.mubr.f32.mxu0 0.0
    %770 = vmatmul.mubr.f32.gmra.mxu0 %v678
    %v771 = vpop.f32.mrf.mxu0
    %v772 = vadd.f32 0.0, %v771
    %v773 = vpop.f32.mrf.mxu0
    %774 = vmatprep.mubr.f32.mxu0 0.0
    %775 = vmatmul.mubr.f32.gmra.mxu0 %v681
    %v776 = vpop.f32.mrf.mxu0
    %v777 = vadd.f32 0.0, %v776
    %v778 = vpop.f32.mrf.mxu0
    %779 = vmatprep.mubr.f32.mxu0 0.0
    %780 = vmatmul.mubr.f32.gmra.mxu0 %v684
    %v781 = vpop.f32.mrf.mxu0
    %v782 = vadd.f32 0.0, %v781
    %v783 = vpop.f32.mrf.mxu0
    %784 = vmatprep.mubr.f32.mxu0 0.0
    %785 = vmatmul.mubr.f32.gmra.mxu0 %v687
    %v786 = vpop.f32.mrf.mxu0
    %v787 = vadd.f32 0.0, %v786
    %v788 = vpop.f32.mrf.mxu0
    %789 = vmatprep.mubr.f32.mxu0 0.0
    %790 = vmatmul.mubr.f32.gmra.mxu0 %v690
    %v791 = vpop.f32.mrf.mxu0
    %v792 = vadd.f32 0.0, %v791
    %v793 = vpop.f32.mrf.mxu0
    %794 = vmatprep.mubr.f32.mxu0 0.0
    %795 = vmatmul.mubr.f32.gmra.mxu0 %v693
    %v796 = vpop.f32.mrf.mxu0
    %v797 = vadd.f32 0.0, %v796
    %v798 = vpop.f32.mrf.mxu0
    %799 = vdwg.mxu0
    %802 = vrot.lane.b32.xlu0 %v772, 8
    %v803 = vpop.permute.xlu0 %802
    %804 = vrot.lane.b32.xlu0 %v777, 8
    %v805 = vpop.permute.xlu0 %804
    %810 = vrot.lane.b32.xlu0 %v782, 16
    %v811 = vpop.permute.xlu0 %810
    %812 = vrot.lane.b32.xlu0 %v787, 16
    %v813 = vpop.permute.xlu0 %812
    %818 = vrot.lane.b32.xlu0 %v792, 24
    %v819 = vpop.permute.xlu0 %818
    %820 = vrot.lane.b32.xlu0 %v797, 24
    %v821 = vpop.permute.xlu0 %820
    %v824 = vsel %vm380, %v762, %v803
    %v825 = vsel %vm380, %v767, %v805
    %v826 = vsel %vm139, %v824, %v811
    %v827 = vsel %vm139, %v825, %v813
    %vm828 = vcmask 195584
    %v829 = vsel %vm828, %v826, %v819
    %v830 = vsel %vm828, %v827, %v821
    %v831 = vlaneseq
    %v832 = vshrl.u32 %v831, 7
    %v833 = vsub.s32 5, %v832
    %v834 = vrot.slane %v51, %v833
    %v836 = vsel %vm221, %v829, 0
    %v839 = vsel %vm221, %v830, 0
    %841 = vmatprep.subr.mxu0 0.0
    %842 = vmatpush1.msra.mxu0 0.0
    %843 = vmatprep.subr.mxu0 0.0
    %844 = vmatpush1.msra.mxu0 0.0
    %845 = vmatprep.subr.mxu0 0.0
    %846 = vmatpush1.msra.mxu0 0.0
    %847 = vmatprep.subr.mxu0 0.0
    %848 = vmatpush1.msra.mxu0 0.0
    %849 = vmatprep.subr.mxu0 0.0
    %850 = vmatpush1.msra.mxu0 0.0
    %851 = vmatprep.subr.mxu0 0.0
    %852 = vmatpush1.msra.mxu0 0.0
    %853 = vmatprep.subr.mxu0 0.0
    %854 = vmatpush1.msra.mxu0 0.0
    %855 = vmatprep.subr.mxu0 0.0
    %856 = vmatpush1.msra.mxu0 0.0
    %857 = vmatprep.subr.mxu0 0.0
    %858 = vmatpush1.msra.mxu0 0.0
    %859 = vmatprep.subr.mxu0 0.0
    %860 = vmatpush1.msra.mxu0 0.0
    %861 = vmatprep.subr.mxu0 0.0
    %862 = vmatpush1.msra.mxu0 0.0
    %863 = vmatprep.subr.mxu0 0.0
    %864 = vmatpush1.msra.mxu0 0.0
    %865 = vmatprep.subr.mxu0 0.0
    %866 = vmatpush1.msra.mxu0 %v50
    %867 = vmatprep.subr.mxu0 0.0
    %868 = vmatpush1.msra.mxu0 %v49
    %869 = vmatprep.subr.mxu0 0.0
    %870 = vmatpush1.msra.mxu0 %v48
    %871 = vmatprep.subr.mxu0 0.0
    %872 = vmatpush1.msra.mxu0 %v47
    %873 = vmatprep.subr.mxu0 0.0
    %874 = vmatpush2.msra.mxu0 0.0
    %875 = vmatprep.subr.mxu0 0.0
    %876 = vmatpush2.msra.mxu0 0.0
    %877 = vmatprep.subr.mxu0 0.0
    %878 = vmatpush2.msra.mxu0 0.0
    %879 = vmatprep.subr.mxu0 0.0
    %880 = vmatpush2.msra.mxu0 0.0
    %881 = vmatprep.subr.mxu0 0.0
    %882 = vmatpush2.msra.mxu0 0.0
    %883 = vmatprep.subr.mxu0 0.0
    %884 = vmatpush2.msra.mxu0 0.0
    %885 = vmatprep.subr.mxu0 0.0
    %886 = vmatpush2.msra.mxu0 0.0
    %887 = vmatprep.subr.mxu0 0.0
    %888 = vmatpush2.msra.mxu0 0.0
    %889 = vmatprep.subr.mxu0 0.0
    %890 = vmatpush2.msra.mxu0 0.0
    %891 = vmatprep.subr.mxu0 0.0
    %892 = vmatpush2.msra.mxu0 0.0
    %893 = vmatprep.subr.mxu0 0.0
    %894 = vmatpush2.msra.mxu0 0.0
    %895 = vmatprep.subr.mxu0 0.0
    %896 = vmatpush2.msra.mxu0 0.0
    %897 = vmatprep.subr.mxu0 0.0
    %898 = vmatpush2.msra.mxu0 0.0
    %899 = vmatprep.subr.mxu0 0.0
    %900 = vmatpush2.msra.mxu0 0.0
    %901 = vmatprep.subr.mxu0 0.0
    %902 = vmatpush2.msra.mxu0 0.0
    %903 = vmatprep.subr.mxu0 0.0
    %904 = vmatpush2.msra.mxu0 0.0
    %905 = vmatprep.mubr.f32.mxu0 0.0
    %906 = vmatmul.mubr.f32.gmra.mxu0 %v836
    %v907 = vpop.f32.mrf.mxu0
    %v908 = vadd.f32 %v834, %v907
    %v909 = vpop.f32.mrf.mxu0
    %910 = vmatprep.mubr.f32.mxu0 0.0
    %911 = vmatmul.mubr.f32.gmra.mxu0 %v839
    %v912 = vpop.f32.mrf.mxu0
    %v913 = vadd.f32 %v834, %v912
    %v914 = vpop.f32.mrf.mxu0
    %915 = vdwg.mxu0
    %v916 = vadd.f32 %v908, %v263
    %v917 = vadd.f32 %v913, %v264
    %v918 = vsel %vm221, %v916, 0.0
    %919 = vadd.xlane.f32.xlu0 %v918
    %v920 = vpop.xlane.xlu0 %919
    %v921 = vsel %vm221, %v917, 0.0
    %922 = vadd.xlane.f32.xlu0 %v921
    %v923 = vpop.xlane.xlu0 %922
    %v924 = vmul.f32 %v920, %v228
    %v925 = vmul.f32 %v923, %v228
    %v926 = vmul.f32 %v916, %v916
    %v927 = vmul.f32 %v917, %v917
    %v928 = vsel %vm221, %v926, 0.0
    %929 = vadd.xlane.f32.xlu0 %v928
    %v930 = vpop.xlane.xlu0 %929
    %v931 = vsel %vm221, %v927, 0.0
    %932 = vadd.xlane.f32.xlu0 %v931
    %v933 = vpop.xlane.xlu0 %932
    %v934 = vmul.f32 %v930, %v228
    %v935 = vmul.f32 %v933, %v228
    %v936 = vmul.f32 %v924, %v924
    %v937 = vmul.f32 %v925, %v925
    %v938 = vsub.f32 %v934, %v936
    %v939 = vsub.f32 %v935, %v937
    %v940 = vsub.f32 %v916, %v924
    %v941 = vsub.f32 %v917, %v925
    %v942 = vadd.f32 %v938, 1e-05
    %v943 = vadd.f32 %v939, 1e-05
    %v944 = vrsqrt.pop %v942
    %v945 = vrsqrt.pop %v943
    %v946 = vmul.f32 %v940, %v944
    %v947 = vmul.f32 %v941, %v945
    %v948 = vlaneseq
    %v949 = vshrl.u32 %v948, 7
    %v950 = vsub.s32 3, %v949
    %v951 = vrot.slane %v51, %v950
    %v952 = vmul.f32 %v946, %v951
    %v953 = vmul.f32 %v947, %v951
    %v954 = vlaneseq
    %v955 = vshrl.u32 %v954, 7
    %v956 = vsub.s32 4, %v955
    %v957 = vrot.slane %v51, %v956
    %v958 = vadd.f32 %v952, %v957
    %v959 = vadd.f32 %v953, %v957
    %v960 = vlaneseq
    %v961 = vshrl.u32 %v960, 7
    %v962 = vsub.s32 6, %v961
    %v963 = vrot.slane %v51, %v962
    %968 = vrot.lane.b32.xlu0 %v47, 96
    %v969 = vpop.permute.xlu0 %968
    %970 = vrot.lane.b32.xlu0 %v48, 96
    %v971 = vpop.permute.xlu0 %970
    %972 = vrot.lane.b32.xlu0 %v49, 96
    %v973 = vpop.permute.xlu0 %972
    %974 = vrot.lane.b32.xlu0 %v50, 96
    %v975 = vpop.permute.xlu0 %974
    %v981 = vsel %vm221, %v958, 0
    %v984 = vsel %vm221, %v959, 0
    %986 = vmatprep.subr.mxu0 0.0
    %987 = vmatpush1.msra.mxu0 0.0
    %988 = vmatprep.subr.mxu0 0.0
    %989 = vmatpush1.msra.mxu0 0.0
    %990 = vmatprep.subr.mxu0 0.0
    %991 = vmatpush1.msra.mxu0 0.0
    %992 = vmatprep.subr.mxu0 0.0
    %993 = vmatpush1.msra.mxu0 0.0
    %994 = vmatprep.subr.mxu0 0.0
    %995 = vmatpush1.msra.mxu0 0.0
    %996 = vmatprep.subr.mxu0 0.0
    %997 = vmatpush1.msra.mxu0 0.0
    %998 = vmatprep.subr.mxu0 0.0
    %999 = vmatpush1.msra.mxu0 0.0
    %1000 = vmatprep.subr.mxu0 0.0
    %1001 = vmatpush1.msra.mxu0 0.0
    %1002 = vmatprep.subr.mxu0 0.0
    %1003 = vmatpush1.msra.mxu0 0.0
    %1004 = vmatprep.subr.mxu0 0.0
    %1005 = vmatpush1.msra.mxu0 0.0
    %1006 = vmatprep.subr.mxu0 0.0
    %1007 = vmatpush1.msra.mxu0 0.0
    %1008 = vmatprep.subr.mxu0 0.0
    %1009 = vmatpush1.msra.mxu0 0.0
    %1010 = vmatprep.subr.mxu0 0.0
    %1011 = vmatpush1.msra.mxu0 %v975
    %1012 = vmatprep.subr.mxu0 0.0
    %1013 = vmatpush1.msra.mxu0 %v973
    %1014 = vmatprep.subr.mxu0 0.0
    %1015 = vmatpush1.msra.mxu0 %v971
    %1016 = vmatprep.subr.mxu0 0.0
    %1017 = vmatpush1.msra.mxu0 %v969
    %1018 = vmatprep.subr.mxu0 0.0
    %1019 = vmatpush2.msra.mxu0 0.0
    %1020 = vmatprep.subr.mxu0 0.0
    %1021 = vmatpush2.msra.mxu0 0.0
    %1022 = vmatprep.subr.mxu0 0.0
    %1023 = vmatpush2.msra.mxu0 0.0
    %1024 = vmatprep.subr.mxu0 0.0
    %1025 = vmatpush2.msra.mxu0 0.0
    %1026 = vmatprep.subr.mxu0 0.0
    %1027 = vmatpush2.msra.mxu0 0.0
    %1028 = vmatprep.subr.mxu0 0.0
    %1029 = vmatpush2.msra.mxu0 0.0
    %1030 = vmatprep.subr.mxu0 0.0
    %1031 = vmatpush2.msra.mxu0 0.0
    %1032 = vmatprep.subr.mxu0 0.0
    %1033 = vmatpush2.msra.mxu0 0.0
    %1034 = vmatprep.subr.mxu0 0.0
    %1035 = vmatpush2.msra.mxu0 0.0
    %1036 = vmatprep.subr.mxu0 0.0
    %1037 = vmatpush2.msra.mxu0 0.0
    %1038 = vmatprep.subr.mxu0 0.0
    %1039 = vmatpush2.msra.mxu0 0.0
    %1040 = vmatprep.subr.mxu0 0.0
    %1041 = vmatpush2.msra.mxu0 0.0
    %1042 = vmatprep.subr.mxu0 0.0
    %1043 = vmatpush2.msra.mxu0 0.0
    %1044 = vmatprep.subr.mxu0 0.0
    %1045 = vmatpush2.msra.mxu0 0.0
    %1046 = vmatprep.subr.mxu0 0.0
    %1047 = vmatpush2.msra.mxu0 0.0
    %1048 = vmatprep.subr.mxu0 0.0
    %1049 = vmatpush2.msra.mxu0 0.0
    %1050 = vmatprep.mubr.f32.mxu0 0.0
    %1051 = vmatmul.mubr.f32.gmra.mxu0 %v981
    %v1052 = vpop.f32.mrf.mxu0
    %v1053 = vadd.f32 %v963, %v1052
    %v1054 = vpop.f32.mrf.mxu0
    %1055 = vmatprep.mubr.f32.mxu0 0.0
    %1056 = vmatmul.mubr.f32.gmra.mxu0 %v984
    %v1057 = vpop.f32.mrf.mxu0
    %v1058 = vadd.f32 %v963, %v1057
    %v1059 = vpop.f32.mrf.mxu0
    %1060 = vdwg.mxu0
    %v1061 = vmax.f32 %v1053, 0.0
    %v1062 = vmax.f32 %v1058, 0.0
    %v1063 = vlaneseq
    %v1064 = vshrl.u32 %v1063, 7
    %v1065 = vsub.s32 7, %v1064
    %v1066 = vrot.slane %v51, %v1065
    %1067 = vrot.lane.b32.xlu0 %v47, 64
    %v1068 = vpop.permute.xlu0 %1067
    %1069 = vrot.lane.b32.xlu0 %v48, 64
    %v1070 = vpop.permute.xlu0 %1069
    %1071 = vrot.lane.b32.xlu0 %v49, 64
    %v1072 = vpop.permute.xlu0 %1071
    %1073 = vrot.lane.b32.xlu0 %v50, 64
    %v1074 = vpop.permute.xlu0 %1073
    %v1080 = vsel %vm221, %v1061, 0
    %v1083 = vsel %vm221, %v1062, 0
    %1085 = vmatprep.subr.mxu0 0.0
    %1086 = vmatpush1.msra.mxu0 0.0
    %1087 = vmatprep.subr.mxu0 0.0
    %1088 = vmatpush1.msra.mxu0 0.0
    %1089 = vmatprep.subr.mxu0 0.0
    %1090 = vmatpush1.msra.mxu0 0.0
    %1091 = vmatprep.subr.mxu0 0.0
    %1092 = vmatpush1.msra.mxu0 0.0
    %1093 = vmatprep.subr.mxu0 0.0
    %1094 = vmatpush1.msra.mxu0 0.0
    %1095 = vmatprep.subr.mxu0 0.0
    %1096 = vmatpush1.msra.mxu0 0.0
    %1097 = vmatprep.subr.mxu0 0.0
    %1098 = vmatpush1.msra.mxu0 0.0
    %1099 = vmatprep.subr.mxu0 0.0
    %1100 = vmatpush1.msra.mxu0 0.0
    %1101 = vmatprep.subr.mxu0 0.0
    %1102 = vmatpush1.msra.mxu0 0.0
    %1103 = vmatprep.subr.mxu0 0.0
    %1104 = vmatpush1.msra.mxu0 0.0
    %1105 = vmatprep.subr.mxu0 0.0
    %1106 = vmatpush1.msra.mxu0 0.0
    %1107 = vmatprep.subr.mxu0 0.0
    %1108 = vmatpush1.msra.mxu0 0.0
    %1109 = vmatprep.subr.mxu0 0.0
    %1110 = vmatpush1.msra.mxu0 %v1074
    %1111 = vmatprep.subr.mxu0 0.0
    %1112 = vmatpush1.msra.mxu0 %v1072
    %1113 = vmatprep.subr.mxu0 0.0
    %1114 = vmatpush1.msra.mxu0 %v1070
    %1115 = vmatprep.subr.mxu0 0.0
    %1116 = vmatpush1.msra.mxu0 %v1068
    %1117 = vmatprep.subr.mxu0 0.0
    %1118 = vmatpush2.msra.mxu0 0.0
    %1119 = vmatprep.subr.mxu0 0.0
    %1120 = vmatpush2.msra.mxu0 0.0
    %1121 = vmatprep.subr.mxu0 0.0
    %1122 = vmatpush2.msra.mxu0 0.0
    %1123 = vmatprep.subr.mxu0 0.0
    %1124 = vmatpush2.msra.mxu0 0.0
    %1125 = vmatprep.subr.mxu0 0.0
    %1126 = vmatpush2.msra.mxu0 0.0
    %1127 = vmatprep.subr.mxu0 0.0
    %1128 = vmatpush2.msra.mxu0 0.0
    %1129 = vmatprep.subr.mxu0 0.0
    %1130 = vmatpush2.msra.mxu0 0.0
    %1131 = vmatprep.subr.mxu0 0.0
    %1132 = vmatpush2.msra.mxu0 0.0
    %1133 = vmatprep.subr.mxu0 0.0
    %1134 = vmatpush2.msra.mxu0 0.0
    %1135 = vmatprep.subr.mxu0 0.0
    %1136 = vmatpush2.msra.mxu0 0.0
    %1137 = vmatprep.subr.mxu0 0.0
    %1138 = vmatpush2.msra.mxu0 0.0
    %1139 = vmatprep.subr.mxu0 0.0
    %1140 = vmatpush2.msra.mxu0 0.0
    %1141 = vmatprep.subr.mxu0 0.0
    %1142 = vmatpush2.msra.mxu0 0.0
    %1143 = vmatprep.subr.mxu0 0.0
    %1144 = vmatpush2.msra.mxu0 0.0
    %1145 = vmatprep.subr.mxu0 0.0
    %1146 = vmatpush2.msra.mxu0 0.0
    %1147 = vmatprep.subr.mxu0 0.0
    %1148 = vmatpush2.msra.mxu0 0.0
    %1149 = vmatprep.mubr.f32.mxu0 0.0
    %1150 = vmatmul.mubr.f32.gmra.mxu0 %v1080
    %v1151 = vpop.f32.mrf.mxu0
    %v1152 = vadd.f32 %v1066, %v1151
    %v1153 = vpop.f32.mrf.mxu0
    %1154 = vmatprep.mubr.f32.mxu0 0.0
    %1155 = vmatmul.mubr.f32.gmra.mxu0 %v1083
    %v1156 = vpop.f32.mrf.mxu0
    %v1157 = vadd.f32 %v1066, %v1156
    %v1158 = vpop.f32.mrf.mxu0
    %1159 = vdwg.mxu0
    %v1160 = vadd.f32 %v1152, %v958
    %v1161 = vadd.f32 %v1157, %v959
    %1162 = vst.msk [vmem:[%s2] sm:$0xff] %vm221, %v1160
    %1163 = vst.msk [vmem:[%s2 + $0x8] sm:$0xff] %vm221, %v1161
    // Predicated region
    $region14: #{encoder_block_pallas.1} parent=1 // pred_check
      _
    $region15: #{encoder_block_pallas.1} parent=1 // pred_check_branch
      %1165 = sbr.rel (0) target = $region17
    $region16: #{encoder_block_pallas.1} parent=1 // pred_region
      _
    $region17: #{encoder_block_pallas.1} parent=1 // pred_fallthru
      _
    // Predicated region
    $region18: #{encoder_block_pallas.1} parent=1 // pred_check
      _
    $region19: #{encoder_block_pallas.1} parent=1 // pred_check_branch
      %1167 = sbr.rel (0) target = $region21
    $region20: #{encoder_block_pallas.1} parent=1 // pred_region
      _
    $region21: #{encoder_block_pallas.1} parent=1 // pred_fallthru
      _
    %1168 = vsyncpa [#allocation3], 1

</llo_original>
